<compile_context>
chip_gen: v5e
topology: v5e:2x2
jax: 0.10.0
libtpu: 0.0.40
codegen_flags: <defaults>
</compile_context>

<pallas_src>
import functools

import jax
import jax.numpy as jnp
from jax.experimental import pallas as pl
from jax.experimental.pallas import tpu as pltpu

_EPS = 1e-6  # matches torch F.pairwise_distance / F.triplet_margin_loss eps


def _round_up(x, m):
    return (x + m - 1) // m * m


def _cdiv(a, b):
    return -(-a // b)


def _triplet_kernel(a_idx_ref, p_idx_ref, n_idx_ref, tab_ref, o_ref, *,
                    margin, p, n_rows, tn, inner_steps):
    o = pl.program_id(0)   # outer chunk ("parallel"; feeds both TCs on v7x)
    k = pl.program_id(1)   # inner reduction step ("arbitrary")

    @pl.when(k == 0)
    def _init():
        o_ref[...] = jnp.zeros_like(o_ref)

    tab = tab_ref[...].astype(jnp.float32)                    # (M, D), VMEM resident
    m = tab.shape[0]

    ia = a_idx_ref[...]                                        # (tn, 1) int32
    ip = p_idx_ref[...]
    ineg = n_idx_ref[...]

    # Fused gather: exact one-hot selection matrices fed to the MXU.
    cols = jax.lax.broadcasted_iota(jnp.int32, (tn, m), 1)
    oh_a = (cols == ia).astype(jnp.float32)
    oh_p = (cols == ip).astype(jnp.float32)
    oh_n = (cols == ineg).astype(jnp.float32)

    # (anchor - positive) and (anchor - negative) directly from one matmul each.
    dp = jnp.dot(oh_a - oh_p, tab, preferred_element_type=jnp.float32,
                 precision=jax.lax.Precision.HIGHEST) + _EPS   # (tn, D)
    dn = jnp.dot(oh_a - oh_n, tab, preferred_element_type=jnp.float32,
                 precision=jax.lax.Precision.HIGHEST) + _EPS   # (tn, D)

    if p == 2:
        d_ap = jnp.sqrt(jnp.sum(dp * dp, axis=-1, keepdims=True))
        d_an = jnp.sqrt(jnp.sum(dn * dn, axis=-1, keepdims=True))
    else:  # generic-p path (not the default config)
        pf = float(p)
        d_ap = jnp.sum(jnp.abs(dp) ** pf, axis=-1, keepdims=True) ** (1.0 / pf)
        d_an = jnp.sum(jnp.abs(dn) ** pf, axis=-1, keepdims=True) ** (1.0 / pf)

    losses = jnp.maximum(d_ap - d_an + margin, 0.0)            # (tn, 1)

    # Ragged-tail mask: padded rows (zero-padded indices in the wrapper) must be
    # excluded via a select so no garbage can leak into the sum.
    row0 = (o * inner_steps + k) * tn
    row = jax.lax.broadcasted_iota(jnp.int32, losses.shape, 0) + row0
    losses = jnp.where(row < n_rows, losses, 0.0)

    # Per-tile scalar reduce (XLU) accumulated into the resident lane-dense
    # (8, 128) output block: one unmasked vreg add/store per step.
    o_ref[...] += jnp.broadcast_to(jnp.sum(losses, keepdims=True), o_ref.shape)


def _pick_tile_rows(n, m, d):
    """Row tile from a VMEM budget for the per-tile f32 intermediates."""
    # ~3 one-hots + 2 one-hot diffs (tn, M) + dp/dn (tn, D), all f32, plus idx blocks.
    per_row = (5 * m + 2 * d) * 4 + 24
    budget = 12 * 1024 * 1024        # conservative: fine on v5e/v6e/v7x
    tn = max(8, min(1024, budget // max(per_row, 1)))
    tn = min(tn, _round_up(n, 8))
    return _round_up(tn, 8)


def triplet_forward(embeddings, anchor_idx, pos_idx, neg_idx, *, margin=0.2,
                    p=2, reduce=True, size_average=True, block_rows=None):
    """Mirror of _Triplet.forward, with sampler indices supplied directly."""
    # TODO(synk): the sampler (triplet mining from labels) is an external module
    # with data-dependent control flow; indices are taken as inputs here.
    if not reduce:
        # TODO(synk): reduce=False (unreduced per-triplet losses) is not the
        # default module config and is not lowered to Pallas.
        raise NotImplementedError("reduce=False path not implemented")

    m, d = embeddings.shape
    n = int(anchor_idx.shape[0])
    itemsize = jnp.dtype(embeddings.dtype).itemsize

    tn = _round_up(int(block_rows), 8) if block_rows is not None else _pick_tile_rows(n, m, d)
    steps = _cdiv(n, tn)
    n_outer = 2 if steps >= 2 else 1        # engages both TCs on v7x; harmless on 1-TC chips
    inner = _cdiv(steps, n_outer)
    n_pad = n_outer * inner * tn

    def prep(idx):
        idx = idx.reshape(-1, 1).astype(jnp.int32)
        if n_pad != n:                      # padding only touches tiny int32 vectors
            idx = jnp.pad(idx, ((0, n_pad - n), (0, 0)))
        return idx

    a_idx, p_idx, n_idx = prep(anchor_idx), prep(pos_idx), prep(neg_idx)

    kernel = functools.partial(_triplet_kernel, margin=float(margin), p=p,
                               n_rows=n, tn=tn, inner_steps=inner)

    # VMEM estimate: table (<=2 buffers) + per-tile intermediates + idx/out blocks.
    est = (2 * m * d * itemsize + (5 * m + 2 * d) * 4 * tn
           + 3 * 2 * tn * 4 + 2 * 8 * 128 * 4)
    vmem_limit = int(min(max(2 * est, 32 * 1024 * 1024), 48 * 1024 * 1024))

    cost = pl.CostEstimate(
        flops=4 * n_pad * m * d + 10 * n_pad * d,
        transcendentals=2 * n_pad,
        bytes_accessed=m * d * itemsize + 3 * n_pad * 4 + n_outer * 8 * 128 * 4,
    )

    out = pl.pallas_call(
        kernel,
        out_shape=jax.ShapeDtypeStruct((n_outer * 8, 128), jnp.float32),
        grid_spec=pltpu.PrefetchScalarGridSpec(
            num_scalar_prefetch=0,
            grid=(n_outer, inner),
            in_specs=[
                pl.BlockSpec((tn, 1), lambda o, k: (o * inner + k, 0)),
                pl.BlockSpec((tn, 1), lambda o, k: (o * inner + k, 0)),
                pl.BlockSpec((tn, 1), lambda o, k: (o * inner + k, 0)),
                pl.BlockSpec((m, d), lambda o, k: (0, 0)),   # table resident in VMEM
            ],
            out_specs=pl.BlockSpec((8, 128), lambda o, k: (o, 0)),
        ),
        compiler_params=pltpu.CompilerParams(
            dimension_semantics=("parallel", "arbitrary"),
            vmem_limit_bytes=vmem_limit,
        ),
        cost_estimate=cost,
    )(a_idx, p_idx, n_idx, embeddings)

    total = jnp.sum(out[0::8, 0])           # one (equal-valued) partial block per chunk
    return total / n if size_average else total


def triplet_forward_ref(embeddings, anchor_idx, pos_idx, neg_idx, *,
                        margin=0.2, p=2, size_average=True):
    """Pure-JAX reference mirroring F.triplet_margin_loss + mean."""
    a = embeddings[anchor_idx]
    pos = embeddings[pos_idx]
    neg = embeddings[neg_idx]
    d_ap = jnp.sum(jnp.abs(a - pos + _EPS) ** p, axis=-1) ** (1.0 / p)
    d_an = jnp.sum(jnp.abs(a - neg + _EPS) ** p, axis=-1) ** (1.0 / p)
    losses = jnp.maximum(d_ap - d_an + margin, 0.0)
    return losses.mean() if size_average else losses.sum()


if __name__ == "__main__":
    key = jax.random.PRNGKey(0)
    num_embed, dim = 64, 128       # batch of embeddings (M, D)
    n_triplets = 20                # not a multiple of 8 -> exercises the ragged-tail mask
    k_e, k_a, k_p, k_n = jax.random.split(key, 4)

    # bf16-exact values keep the one-hot MXU gather bit-exact regardless of the
    # f32 matmul pass count, so the checks below are precision-robust.
    embeddings = jax.random.normal(k_e, (num_embed, dim), dtype=jnp.float32)
    embeddings = embeddings.astype(jnp.bfloat16).astype(jnp.float32)
    anchor_idx = jax.random.randint(k_a, (n_triplets,), 0, num_embed)
    pos_idx = jax.random.randint(k_p, (n_triplets,), 0, num_embed)
    neg_idx = jax.random.randint(k_n, (n_triplets,), 0, num_embed)

    ref = triplet_forward_ref(embeddings, anchor_idx, pos_idx, neg_idx,
                              margin=0.2, p=2)

    # block_rows=8 -> 2 outer chunks x 2 inner steps (multi-step accumulation path).
    loss_small = triplet_forward(embeddings, anchor_idx, pos_idx, neg_idx,
                                 margin=0.2, p=2, block_rows=8)
    # auto tile -> single-step path.
    loss_auto = triplet_forward(embeddings, anchor_idx, pos_idx, neg_idx,
                                margin=0.2, p=2)
    jax.block_until_ready((loss_small, loss_auto))

    assert loss_small.shape == () and loss_auto.shape == ()
    assert jnp.allclose(loss_small, ref, rtol=1e-5, atol=1e-6), (loss_small, ref)
    assert jnp.allclose(loss_auto, ref, rtol=1e-5, atol=1e-6), (loss_auto, ref)
    print("KERNEL_OK")
</pallas_src>

<mosaic_0001>
module attributes {stable_mosaic.version = 11 : i64} {
  func.func @_triplet_kernel(%arg0: i32, %arg1: i32, %arg2: memref<8x1xi32, #tpu.memory_space<vmem>>, %arg3: memref<8x1xi32, #tpu.memory_space<vmem>>, %arg4: memref<8x1xi32, #tpu.memory_space<vmem>>, %arg5: memref<64x128xf32, #tpu.memory_space<vmem>>, %arg6: memref<8x128xf32, #tpu.memory_space<vmem>>) attributes {dimension_semantics = [#tpu.dimension_semantics<parallel>, #tpu.dimension_semantics<arbitrary>], iteration_bounds = array<i64: 2, 2>, scalar_prefetch = 0 : i64, scratch_operands = 0 : i64, tpu.core_type = #tpu.core_type<tc>, window_params = [{transform_indices = @transform_0, window_bounds = array<i64: 8, 1>}, {transform_indices = @transform_1, window_bounds = array<i64: 8, 1>}, {transform_indices = @transform_2, window_bounds = array<i64: 8, 1>}, {pipeline_mode = #tpu.pipeline_mode<synchronous>, transform_indices = @transform_3, window_bounds = array<i64: 64, 128>}, {transform_indices = @transform_4, window_bounds = array<i64: 8, 128>}]} {
    %c0_i32 = arith.constant 0 : i32
    %0 = arith.cmpi eq, %arg1, %c0_i32 : i32
    %1 = arith.extui %0 : i1 to i32
    %c0_i32_0 = arith.constant 0 : i32
    %2 = arith.cmpi ne, %1, %c0_i32_0 : i32
    scf.if %2 {
      %cst_21 = arith.constant 0.000000e+00 : f32
      %61 = vector.broadcast %cst_21 : f32 to vector<8x128xf32>
      %c0_22 = arith.constant 0 : index
      %c0_23 = arith.constant 0 : index
      %62 = vector.load %arg6[%c0_22, %c0_23] : memref<8x128xf32, #tpu.memory_space<vmem>>, vector<8x128xf32>
      tpu.vector_store %arg6[%c0_22, %c0_23], %61 {strides = array<i32>} : memref<8x128xf32, #tpu.memory_space<vmem>>, vector<8x128xf32>,
    } else {
    }
    %c0 = arith.constant 0 : index
    %c0_1 = arith.constant 0 : index
    %3 = vector.load %arg5[%c0, %c0_1] : memref<64x128xf32, #tpu.memory_space<vmem>>, vector<64x128xf32>
    %c0_2 = arith.constant 0 : index
    %c0_3 = arith.constant 0 : index
    %4 = vector.load %arg2[%c0_2, %c0_3] : memref<8x1xi32, #tpu.memory_space<vmem>>, vector<8x1xi32>
    %c0_4 = arith.constant 0 : index
    %c0_5 = arith.constant 0 : index
    %5 = vector.load %arg3[%c0_4, %c0_5] : memref<8x1xi32, #tpu.memory_space<vmem>>, vector<8x1xi32>
    %c0_6 = arith.constant 0 : index
    %c0_7 = arith.constant 0 : index
    %6 = vector.load %arg4[%c0_6, %c0_7] : memref<8x1xi32, #tpu.memory_space<vmem>>, vector<8x1xi32>
    %7 = tpu.iota {dimensions = array<i32: 1>} : vector<8x64xi32>
    %8 = vector.broadcast %4 : vector<8x1xi32> to vector<8x64xi32>
    %9 = arith.cmpi eq, %7, %8 : vector<8x64xi32>
    %10 = arith.extui %9 : vector<8x64xi1> to vector<8x64xi32>
    %11 = arith.sitofp %10 : vector<8x64xi32> to vector<8x64xf32>
    %12 = vector.broadcast %5 : vector<8x1xi32> to vector<8x64xi32>
    %13 = arith.cmpi eq, %7, %12 : vector<8x64xi32>
    %14 = arith.extui %13 : vector<8x64xi1> to vector<8x64xi32>
    %15 = arith.sitofp %14 : vector<8x64xi32> to vector<8x64xf32>
    %16 = vector.broadcast %6 : vector<8x1xi32> to vector<8x64xi32>
    %17 = arith.cmpi eq, %7, %16 : vector<8x64xi32>
    %18 = arith.extui %17 : vector<8x64xi1> to vector<8x64xi32>
    %19 = arith.sitofp %18 : vector<8x64xi32> to vector<8x64xf32>
    %20 = arith.subf %11, %15 : vector<8x64xf32>
    %cst = arith.constant dense<0.000000e+00> : vector<8x128xf32>
    %21 = tpu.matmul %20, %3, %cst {dimension_numbers = #tpu.dot_dimension_numbers<[1], [0], [0], [1], [0, 0, 1, 1], [], []>, precision = #tpu.contract_precision<fp32>} : vector<8x64xf32>, vector<64x128xf32>, vector<8x128xf32> -> vector<8x128xf32>
    %cst_8 = arith.constant 9.99999997E-7 : f32
    %22 = vector.broadcast %cst_8 : f32 to vector<8x128xf32>
    %23 = arith.addf %21, %22 : vector<8x128xf32>
    %24 = arith.subf %11, %19 : vector<8x64xf32>
    %cst_9 = arith.constant dense<0.000000e+00> : vector<8x128xf32>
    %25 = tpu.matmul %24, %3, %cst_9 {dimension_numbers = #tpu.dot_dimension_numbers<[1], [0], [0], [1], [0, 0, 1, 1], [], []>, precision = #tpu.contract_precision<fp32>} : vector<8x64xf32>, vector<64x128xf32>, vector<8x128xf32> -> vector<8x128xf32>
    %cst_10 = arith.constant 9.99999997E-7 : f32
    %26 = vector.broadcast %cst_10 : f32 to vector<8x128xf32>
    %27 = arith.addf %25, %26 : vector<8x128xf32>
    %28 = arith.mulf %23, %23 : vector<8x128xf32>
    %cst_11 = arith.constant dense<0.000000e+00> : vector<8xf32>
    %29 = vector.multi_reduction <add>, %28, %cst_11 [1] : vector<8x128xf32> to vector<8xf32>
    %30 = vector.shape_cast %29 : vector<8xf32> to vector<8x1xf32>
    %31 = math.sqrt %30 : vector<8x1xf32>
    %32 = arith.mulf %27, %27 : vector<8x128xf32>
    %cst_12 = arith.constant dense<0.000000e+00> : vector<8xf32>
    %33 = vector.multi_reduction <add>, %32, %cst_12 [1] : vector<8x128xf32> to vector<8xf32>
    %34 = vector.shape_cast %33 : vector<8xf32> to vector<8x1xf32>
    %35 = math.sqrt %34 : vector<8x1xf32>
    %36 = arith.subf %31, %35 : vector<8x1xf32>
    %cst_13 = arith.constant 2.000000e-01 : f32
    %37 = vector.broadcast %cst_13 : f32 to vector<8x1xf32>
    %38 = arith.addf %36, %37 : vector<8x1xf32>
    %cst_14 = arith.constant 0.000000e+00 : f32
    %39 = vector.broadcast %cst_14 : f32 to vector<8x1xf32>
    %40 = arith.maximumf %38, %39 : vector<8x1xf32>
    %c2_i32 = arith.constant 2 : i32
    %41 = arith.muli %arg0, %c2_i32 : i32
    %42 = arith.addi %41, %arg1 : i32
    %c8_i32 = arith.constant 8 : i32
    %43 = arith.muli %42, %c8_i32 : i32
    %44 = tpu.iota {dimensions = array<i32: 0>} : vector<8x1xi32>
    %45 = vector.broadcast %43 : i32 to vector<8x1xi32>
    %46 = arith.addi %44, %45 : vector<8x1xi32>
    %c20_i32 = arith.constant 20 : i32
    %47 = vector.broadcast %c20_i32 : i32 to vector<8x1xi32>
    %48 = arith.cmpi slt, %46, %47 : vector<8x1xi32>
    %cst_15 = arith.constant 0.000000e+00 : f32
    %49 = vector.broadcast %cst_15 : f32 to vector<8x1xf32>
    %50 = arith.select %48, %40, %49 : vector<8x1xi1>, vector<8x1xf32>
    %c0_16 = arith.constant 0 : index
    %c0_17 = arith.constant 0 : index
    %51 = vector.load %arg6[%c0_16, %c0_17] : memref<8x128xf32, #tpu.memory_space<vmem>>, vector<8x128xf32>
    %52 = vector.shape_cast %50 : vector<8x1xf32> to vector<1x8x1xf32>
    %cst_18 = arith.constant dense<0.000000e+00> : vector<1xf32>
    %53 = vector.multi_reduction <add>, %52, %cst_18 [1, 2] : vector<1x8x1xf32> to vector<1xf32>
    %54 = vector.shape_cast %53 : vector<1xf32> to vector<1x1x1xf32>
    %55 = vector.extract %54[0, 0, 0] : f32 from vector<1x1x1xf32>
    %56 = vector.broadcast %55 : f32 to vector<1x1xf32>
    %57 = vector.shape_cast %56 : vector<1x1xf32> to vector<1x1xf32>
    %58 = vector.broadcast %57 : vector<1x1xf32> to vector<8x128xf32>
    %59 = arith.addf %51, %58 : vector<8x128xf32>
    %c0_19 = arith.constant 0 : index
    %c0_20 = arith.constant 0 : index
    %60 = vector.load %arg6[%c0_19, %c0_20] : memref<8x128xf32, #tpu.memory_space<vmem>>, vector<8x128xf32>
    tpu.vector_store %arg6[%c0_19, %c0_20], %59 {strides = array<i32>} : memref<8x128xf32, #tpu.memory_space<vmem>>, vector<8x128xf32>,
    return
  }
  func.func @transform_0(%arg0: i32, %arg1: i32) -> (i32, i32) {
    %c2_i32 = arith.constant 2 : i32
    %0 = arith.muli %arg0, %c2_i32 : i32
    %1 = arith.addi %0, %arg1 : i32
    %c0_i32 = arith.constant 0 : i32
    %c0_i32_0 = arith.constant 0 : i32
    return %1, %c0_i32 : i32, i32
  }
  func.func @transform_1(%arg0: i32, %arg1: i32) -> (i32, i32) {
    %c2_i32 = arith.constant 2 : i32
    %0 = arith.muli %arg0, %c2_i32 : i32
    %1 = arith.addi %0, %arg1 : i32
    %c0_i32 = arith.constant 0 : i32
    %c0_i32_0 = arith.constant 0 : i32
    return %1, %c0_i32 : i32, i32
  }
  func.func @transform_2(%arg0: i32, %arg1: i32) -> (i32, i32) {
    %c2_i32 = arith.constant 2 : i32
    %0 = arith.muli %arg0, %c2_i32 : i32
    %1 = arith.addi %0, %arg1 : i32
    %c0_i32 = arith.constant 0 : i32
    %c0_i32_0 = arith.constant 0 : i32
    return %1, %c0_i32 : i32, i32
  }
  func.func @transform_3(%arg0: i32, %arg1: i32) -> (i32, i32) {
    %c0_i32 = arith.constant 0 : i32
    %c0_i32_0 = arith.constant 0 : i32
    %c0_i32_1 = arith.constant 0 : i32
    return %c0_i32, %c0_i32_0 : i32, i32
  }
  func.func @transform_4(%arg0: i32, %arg1: i32) -> (i32, i32) {
    %c0_i32 = arith.constant 0 : i32
    %c0_i32_0 = arith.constant 0 : i32
    return %arg0, %c0_i32 : i32, i32
  }
}

</mosaic_0001>

<llo_original>
// kernel: tpu_custom_call.1
$region0: #{tpu_custom_call.1}
  #allocation0 [shape = 'u32[]', space=smem, size = 0x4, offset = 0x4, fixed_abs, tag = 'smem constant byte address 0x4 - core index']
  #allocation1 [shape = 'u32[72,128]{1,0:T(1,128)}', space=vmem, size = 0x9000, scoped, tag = 'internal scratch']
  %s0 = inlined_call_operand.vmem [shape: s32[32,1], index: 0, kind: input, shape index: {}]
  %s1 = inlined_call_operand.vmem [shape: s32[32,1], index: 1, kind: input, shape index: {}]
  %s2 = inlined_call_operand.vmem [shape: s32[32,1], index: 2, kind: input, shape index: {}]
  %s3 = inlined_call_operand.vmem [shape: f32[64,128], index: 3, kind: input, shape index: {}]
  %s4 = inlined_call_operand.hbm [shape: f32[16,128], index: 4, kind: output, shape index: {}]
  %s5 = sld [smem:[#allocation0]]
  $region53: #{tpu_custom_call.1} parent=0
    _
  %s7 = ssub.s32 1, %s5
  %s8 = scalar_select 0, %s7, %s5
  $region1: #{tpu_custom_call.1} parent=0
    #allocation2 [shape = 'u8[8192]{0}', space=vmem, size = 0x2000, scoped, tag = 'output window, operand 0']
    #allocation3 [shape = 's32[2]{0}', space=sflag, size = 0x8, scoped, tag = 'scoped memory for tpu_custom_call.1']
    %9 = vsyncpa [#allocation3], 0
    %s10 = scalar_lea.sflag [#allocation3], 1
    %11 = vsyncpa %s10, 0
    loop: start=0, step=1, limit=6
    $region2: #{tpu_custom_call.1} parent=1 // loop_pre_header
      _
    $region3: #{tpu_custom_call.1} parent=1 // loop_header
      %s13 = sphi 0, %s17
      %p14 = scmp.ge.s32.totalorder %s13, 6
      %s20 = sphi 0, %s32
      %s21 = sphi 0, %s28
      %s22 = sphi 0, %s20
      %s23 = sphi 0, %s21
      %s24 = sphi 0, %s22
      %s25 = sphi 0, %s23
      %s39 = sphi 0, %s41
      %s42 = sphi 0, %s39
      %s43 = sphi 0, %s42
      %s59 = sphi 0, %s43
      %s69 = sphi 0, %s71
      %s72 = sphi 0, %s69
      %s73 = sphi 0, %s72
      %s89 = sphi 0, %s73
      %s99 = sphi 0, %s101
      %s102 = sphi 0, %s99
      %s103 = sphi 0, %s102
      %s119 = sphi 0, %s103
      %s123 = sphi 0, %s123
      %s125 = sphi 0, %s123
      %s126 = sphi 0, %s125
      %s140 = sphi 0, %s126
      %s146 = sphi 0, %s148
      %s149 = sphi 0, %s146
      %s150 = sphi 0, %s149
      %s166 = sphi 0, %s150
    $region4: #{tpu_custom_call.1} parent=1 // loop_header_branch
      %16 = sbr.rel (%p14) target = $region8
    $region5: #{tpu_custom_call.1} parent=1 // loop_body
      %s18 = ssub.s32 %s13, 1
      %s19 = ssub.s32 %s13, 2
      %s26 = sadd.s32 1, %s21
      %p27 = scmp.ge.s32.totalorder %s26, 2
      %s28 = scalar_select %p27, 0, %s26
      %s29 = sadd.s32 1, %s20
      %s30 = scalar_select %p27, %s29, %s20
      %p31 = scmp.ge.s32.totalorder %s30, 2
      %s32 = scalar_select %p31, 0, %s30
      %s33 = smul.u32 %s20, 2
      %s34 = sadd.s32 %s33, %s21
      %s35 = smul.u32 %s32, 2
      %s36 = sadd.s32 %s35, %s28
      %s37 = ssub.s32 %s34, %s36
      %p38 = scmp.eq.s32.totalorder %s37, 0
      %s40 = sadd.s32 %s39, 1
      %s41 = scalar_select %p38, %s39, %s40
      %p44 = pneg %p38
      %p45 = scmp.eq.s32.totalorder %s13, 3
      %p46 = por %p44, %p45
      %p47 = scmp.ne.s32.totalorder %s39, %s42
      %p48 = scmp.eq.s32.totalorder %s13, 0
      %p49 = por %p47, %p48
      %p50 = scmp.ne.s32.totalorder %s39, %s42
      %p51 = scmp.eq.s32.totalorder %s18, 3
      %p52 = por %p50, %p51
      %p53 = scmp.ne.s32.totalorder %s42, %s43
      %p54 = scmp.eq.s32.totalorder %s18, 0
      %p55 = por %p53, %p54
      %p56 = scmp.ne.s32.totalorder %s42, %s43
      %p57 = scmp.eq.s32.totalorder %s19, 3
      %p58 = por %p56, %p57
      %p60 = scmp.ne.s32.totalorder %s43, %s59
      %p61 = scmp.eq.s32.totalorder %s19, 0
      %p62 = por %p60, %p61
      %s63 = smul.u32 %s20, 2
      %s64 = sadd.s32 %s63, %s21
      %s65 = smul.u32 %s32, 2
      %s66 = sadd.s32 %s65, %s28
      %s67 = ssub.s32 %s64, %s66
      %p68 = scmp.eq.s32.totalorder %s67, 0
      %s70 = sadd.s32 %s69, 1
      %s71 = scalar_select %p68, %s69, %s70
      %p74 = pneg %p68
      %p75 = scmp.eq.s32.totalorder %s13, 3
      %p76 = por %p74, %p75
      %p77 = scmp.ne.s32.totalorder %s69, %s72
      %p78 = scmp.eq.s32.totalorder %s13, 0
      %p79 = por %p77, %p78
      %p80 = scmp.ne.s32.totalorder %s69, %s72
      %p81 = scmp.eq.s32.totalorder %s18, 3
      %p82 = por %p80, %p81
      %p83 = scmp.ne.s32.totalorder %s72, %s73
      %p84 = scmp.eq.s32.totalorder %s18, 0
      %p85 = por %p83, %p84
      %p86 = scmp.ne.s32.totalorder %s72, %s73
      %p87 = scmp.eq.s32.totalorder %s19, 3
      %p88 = por %p86, %p87
      %p90 = scmp.ne.s32.totalorder %s73, %s89
      %p91 = scmp.eq.s32.totalorder %s19, 0
      %p92 = por %p90, %p91
      %s93 = smul.u32 %s20, 2
      %s94 = sadd.s32 %s93, %s21
      %s95 = smul.u32 %s32, 2
      %s96 = sadd.s32 %s95, %s28
      %s97 = ssub.s32 %s94, %s96
      %p98 = scmp.eq.s32.totalorder %s97, 0
      %s100 = sadd.s32 %s99, 1
      %s101 = scalar_select %p98, %s99, %s100
      %p104 = pneg %p98
      %p105 = scmp.eq.s32.totalorder %s13, 3
      %p106 = por %p104, %p105
      %p107 = scmp.ne.s32.totalorder %s99, %s102
      %p108 = scmp.eq.s32.totalorder %s13, 0
      %p109 = por %p107, %p108
      %p110 = scmp.ne.s32.totalorder %s99, %s102
      %p111 = scmp.eq.s32.totalorder %s18, 3
      %p112 = por %p110, %p111
      %p113 = scmp.ne.s32.totalorder %s102, %s103
      %p114 = scmp.eq.s32.totalorder %s18, 0
      %p115 = por %p113, %p114
      %p116 = scmp.ne.s32.totalorder %s102, %s103
      %p117 = scmp.eq.s32.totalorder %s19, 3
      %p118 = por %p116, %p117
      %p120 = scmp.ne.s32.totalorder %s103, %s119
      %p121 = scmp.eq.s32.totalorder %s19, 0
      %p122 = por %p120, %p121
      %s124 = sadd.s32 %s123, 1
      %p127 = scmp.eq.s32.totalorder %s13, 3
      %p128 = scmp.ne.s32.totalorder %s123, %s125
      %p129 = scmp.eq.s32.totalorder %s13, 0
      %p130 = por %p128, %p129
      %p131 = scmp.ne.s32.totalorder %s123, %s125
      %p132 = scmp.eq.s32.totalorder %s18, 3
      %p133 = por %p131, %p132
      %p134 = scmp.ne.s32.totalorder %s125, %s126
      %p135 = scmp.eq.s32.totalorder %s18, 0
      %p136 = por %p134, %p135
      %p137 = scmp.ne.s32.totalorder %s125, %s126
      %p138 = scmp.eq.s32.totalorder %s19, 3
      %p139 = por %p137, %p138
      %p141 = scmp.ne.s32.totalorder %s126, %s140
      %p142 = scmp.eq.s32.totalorder %s19, 0
      %p143 = por %p141, %p142
      %s144 = ssub.s32 %s20, %s32
      %p145 = scmp.eq.s32.totalorder %s144, 0
      %s147 = sadd.s32 %s146, 1
      %s148 = scalar_select %p145, %s146, %s147
      %p151 = pneg %p145
      %p152 = scmp.eq.s32.totalorder %s13, 3
      %p153 = por %p151, %p152
      %p154 = scmp.ne.s32.totalorder %s146, %s149
      %p155 = scmp.eq.s32.totalorder %s13, 0
      %p156 = por %p154, %p155
      %p157 = scmp.ne.s32.totalorder %s146, %s149
      %p158 = scmp.eq.s32.totalorder %s18, 3
      %p159 = por %p157, %p158
      %p160 = scmp.ne.s32.totalorder %s149, %s150
      %p161 = scmp.eq.s32.totalorder %s18, 0
      %p162 = por %p160, %p161
      %p163 = scmp.ne.s32.totalorder %s149, %s150
      %p164 = scmp.eq.s32.totalorder %s19, 3
      %p165 = por %p163, %p164
      %p167 = scmp.ne.s32.totalorder %s150, %s166
      %p168 = scmp.eq.s32.totalorder %s19, 0
      %p169 = por %p167, %p168
      %p170 = scmp.le.s32.totalorder 1, %s13
      %p171 = scmp.lt.s32.totalorder %s13, 5
      %p172 = pnand %p170, %p171
      %p173 = pneg %p172
      // Predicated region
      $region9: #{tpu_custom_call.1} parent=5 // pred_check
        _
      $region10: #{tpu_custom_call.1} parent=5 // pred_check_branch
        %175 = sbr.rel (%p172) target = $region12
      $region11: #{tpu_custom_call.1} parent=5 // pred_region
        %s176 = ssub.s32 %s13, 1
        // Predicated region
        $region13: #{tpu_custom_call.1} parent=11 // pred_check
          %p177 = pneg %p136
        $region14: #{tpu_custom_call.1} parent=11 // pred_check_branch
          %179 = sbr.rel (%p177) target = $region16
        $region15: #{tpu_custom_call.1} parent=11 // pred_region
          _
        $region16: #{tpu_custom_call.1} parent=11 // pred_fallthru
          _
      $region12: #{tpu_custom_call.1} parent=5 // pred_fallthru
        _
      %p180 = scmp.lt.s32.totalorder %s13, 4
      // Predicated region
      $region17: #{tpu_custom_call.1} parent=5 // pred_check
        %p181 = pneg %p180
      $region18: #{tpu_custom_call.1} parent=5 // pred_check_branch
        %183 = sbr.rel (%p181) target = $region20
      $region19: #{tpu_custom_call.1} parent=5 // pred_region
        // Predicated region
        $region21: #{tpu_custom_call.1} parent=19 // pred_check
          %p184 = pneg %p49
        $region22: #{tpu_custom_call.1} parent=19 // pred_check_branch
          %186 = sbr.rel (%p184) target = $region24
        $region23: #{tpu_custom_call.1} parent=19 // pred_region
          %s187 = smul.u32 %s20, 2
          %s188 = sadd.s32 %s187, %s21
          %p189 = scmp.lt.s32.totalorder %s188, 3
          %s190 = scalar_select %p189, %s188, 3
          %s191 = smul.addr %s190, 8
          %s192 = scalar_lea.vmem %s0, %s191
          %s193 = smul.u32 %s20, 2
          %s194 = sadd.s32 %s193, %s21
        $region24: #{tpu_custom_call.1} parent=19 // pred_fallthru
          _
        // Predicated region
        $region25: #{tpu_custom_call.1} parent=19 // pred_check
          %p195 = pneg %p79
        $region26: #{tpu_custom_call.1} parent=19 // pred_check_branch
          %197 = sbr.rel (%p195) target = $region28
        $region27: #{tpu_custom_call.1} parent=19 // pred_region
          %s198 = smul.u32 %s20, 2
          %s199 = sadd.s32 %s198, %s21
          %p200 = scmp.lt.s32.totalorder %s199, 3
          %s201 = scalar_select %p200, %s199, 3
          %s202 = smul.addr %s201, 8
          %s203 = scalar_lea.vmem %s1, %s202
          %s204 = smul.u32 %s20, 2
          %s205 = sadd.s32 %s204, %s21
        $region28: #{tpu_custom_call.1} parent=19 // pred_fallthru
          _
        // Predicated region
        $region29: #{tpu_custom_call.1} parent=19 // pred_check
          %p206 = pneg %p109
        $region30: #{tpu_custom_call.1} parent=19 // pred_check_branch
          %208 = sbr.rel (%p206) target = $region32
        $region31: #{tpu_custom_call.1} parent=19 // pred_region
          %s209 = smul.u32 %s20, 2
          %s210 = sadd.s32 %s209, %s21
          %p211 = scmp.lt.s32.totalorder %s210, 3
          %s212 = scalar_select %p211, %s210, 3
          %s213 = smul.addr %s212, 8
          %s214 = scalar_lea.vmem %s2, %s213
          %s215 = smul.u32 %s20, 2
          %s216 = sadd.s32 %s215, %s21
        $region32: #{tpu_custom_call.1} parent=19 // pred_fallthru
          _
      $region20: #{tpu_custom_call.1} parent=5 // pred_fallthru
        _
      %p217 = scmp.le.s32.totalorder 1, %s13
      %p218 = scmp.lt.s32.totalorder %s13, 5
      %p219 = pnand %p217, %p218
      %p220 = pneg %p219
      // Predicated region
      $region33: #{tpu_custom_call.1} parent=5 // pred_check
        _
      $region34: #{tpu_custom_call.1} parent=5 // pred_check_branch
        %222 = sbr.rel (%p219) target = $region36
      $region35: #{tpu_custom_call.1} parent=5 // pred_region
        %s223 = ssub.s32 %s13, 1
        %s224 = smul.u32 %s22, 2
        %s225 = sadd.s32 %s224, %s23
        %p226 = scmp.lt.s32.totalorder %s225, 3
        %s227 = scalar_select %p226, %s225, 3
        %s228 = smul.addr %s227, 8
        %s229 = scalar_lea.vmem %s0, %s228
        %p230 = pneg %p55
        %p231 = pneg %p52
        %s232 = smul.u32 %s22, 2
        %s233 = sadd.s32 %s232, %s23
        %p234 = scmp.lt.s32.totalorder %s233, 3
        %s235 = scalar_select %p234, %s233, 3
        %s236 = smul.addr %s235, 8
        %s237 = scalar_lea.vmem %s1, %s236
        %p238 = pneg %p85
        %p239 = pneg %p82
        %s240 = smul.u32 %s22, 2
        %s241 = sadd.s32 %s240, %s23
        %p242 = scmp.lt.s32.totalorder %s241, 3
        %s243 = scalar_select %p242, %s241, 3
        %s244 = smul.addr %s243, 8
        %s245 = scalar_lea.vmem %s2, %s244
        %p246 = pneg %p115
        %p247 = pneg %p112
        %p248 = pneg %p136
        %p249 = pneg %p133
        %p250 = pneg %p162
        %p251 = pneg %p159
        %s252 = sand.u32 %s149, 1
        %s253 = scalar_lea.sflag [#allocation3], %s252
        %s254 = sand.u32 %s149, 1
        %s255 = smul.addr %s254, 8
        %s256 = scalar_lea.vmem [#allocation2], %s255
        %s257 = smul.u32 %s22, 2
        %s258 = sadd.s32 %s257, %s23
        %p259 = scmp.lt.s32.totalorder %s258, 3
        %s260 = scalar_select %p259, %s258, 3
        %s261 = smul.addr %s260, 8
        %s262 = scalar_lea.vmem %s0, %s261
        %s263 = smul.u32 %s22, 2
        %s264 = sadd.s32 %s263, %s23
        %s265 = smul.u32 %s22, 2
        %s266 = sadd.s32 %s265, %s23
        %p267 = scmp.lt.s32.totalorder %s266, 3
        %s268 = scalar_select %p267, %s266, 3
        %s269 = smul.addr %s268, 8
        %s270 = scalar_lea.vmem %s1, %s269
        %s271 = smul.u32 %s22, 2
        %s272 = sadd.s32 %s271, %s23
        %s273 = smul.u32 %s22, 2
        %s274 = sadd.s32 %s273, %s23
        %p275 = scmp.lt.s32.totalorder %s274, 3
        %s276 = scalar_select %p275, %s274, 3
        %s277 = smul.addr %s276, 8
        %s278 = scalar_lea.vmem %s2, %s277
        %s279 = smul.u32 %s22, 2
        %s280 = sadd.s32 %s279, %s23
        %p281 = scmp.eq.s32.totalorder %s23, 0
        // Predicated region
        $region37: #{tpu_custom_call.1} parent=35 // pred_check
          %p282 = pneg %p281
        $region38: #{tpu_custom_call.1} parent=35 // pred_check_branch
          %284 = sbr.rel (%p282) target = $region40
        $region39: #{tpu_custom_call.1} parent=35 // pred_region
          %285 = vst [vmem:[%s256] sm:$0xff] 0.0
        $region40: #{tpu_custom_call.1} parent=35 // pred_fallthru
          _
        %v286 = vld [vmem:[%s3] sm:$0xff]
        %v287 = vld [vmem:[%s3 + $0x8] sm:$0xff]
        %v288 = vld [vmem:[%s3 + $0x10] sm:$0xff]
        %v289 = vld [vmem:[%s3 + $0x18] sm:$0xff]
        %v290 = vld [vmem:[%s3 + $0x20] sm:$0xff]
        %v291 = vld [vmem:[%s3 + $0x28] sm:$0xff]
        %v292 = vld [vmem:[%s3 + $0x30] sm:$0xff]
        %v293 = vld [vmem:[%s3 + $0x38] sm:$0xff]
        %v294 = vld [vmem:[%s262] sm:$0xff]
        %v295 = vld [vmem:[%s270] sm:$0xff]
        %v296 = vld [vmem:[%s278] sm:$0xff]
        %v297 = vlaneseq
        %v298 = vand.u32 %v297, 127
        %299 = vset.pattern.permute.xlu0 0
        %300 = vperm.xlu0 %299, %v294
        %v301 = vpop.permute.xlu0 %300
        %vm302 = vcmp.eq.s32.totalorder %v298, %v301
        %v303 = vsel %vm302, 1, 0
        %v304 = vcvt.s32.f32 %v303
        %305 = vset.pattern.permute.xlu0 0
        %306 = vperm.xlu0 %305, %v295
        %v307 = vpop.permute.xlu0 %306
        %vm308 = vcmp.eq.s32.totalorder %v298, %v307
        %v309 = vsel %vm308, 1, 0
        %v310 = vcvt.s32.f32 %v309
        %311 = vset.pattern.permute.xlu0 0
        %312 = vperm.xlu0 %311, %v296
        %v313 = vpop.permute.xlu0 %312
        %vm314 = vcmp.eq.s32.totalorder %v298, %v313
        %v315 = vsel %vm314, 1, 0
        %v316 = vcvt.s32.f32 %v315
        %v317 = vsub.f32 %v304, %v310
        %vm318 = vcmask 523264
        %v320 = vsel %vm318, %v317, 0
        %322 = vmatpush.msra.mxu0 0.0
        %323 = vmatpush.msra.mxu0 0.0
        %324 = vmatpush.msra.mxu0 0.0
        %325 = vmatpush.msra.mxu0 0.0
        %326 = vmatpush.msra.mxu0 0.0
        %327 = vmatpush.msra.mxu0 0.0
        %328 = vmatpush.msra.mxu0 0.0
        %329 = vmatpush.msra.mxu0 0.0
        %v330 = vand.u32 %v293, 4294901760
        %331 = vmatpush.msra.mxu0 %v330
        %v332 = vand.u32 %v292, 4294901760
        %333 = vmatpush.msra.mxu0 %v332
        %v334 = vand.u32 %v291, 4294901760
        %335 = vmatpush.msra.mxu0 %v334
        %v336 = vand.u32 %v290, 4294901760
        %337 = vmatpush.msra.mxu0 %v336
        %v338 = vand.u32 %v289, 4294901760
        %339 = vmatpush.msra.mxu0 %v338
        %v340 = vand.u32 %v288, 4294901760
        %341 = vmatpush.msra.mxu0 %v340
        %v342 = vand.u32 %v287, 4294901760
        %343 = vmatpush.msra.mxu0 %v342
        %v344 = vand.u32 %v286, 4294901760
        %345 = vmatpush.msra.mxu0 %v344
        %v346 = vand.u32 %v320, 4294901760
        %v347 = vsub.f32 %v320, %v346
        %v348 = vand.u32 %v347, 4294901760
        %v349 = vsub.f32 %v347, %v348
        %v350 = vand.u32 %v349, 4294901760
        %351 = vmatmul.f32.gmra.mxu0 %v350
        %v352 = vpop.f32.mrf.mxu0
        %v353 = vadd.f32 1e-06, %v352
        %354 = vdwg.mxu0
        %355 = vmatpush.msra.mxu0 0.0
        %356 = vmatpush.msra.mxu0 0.0
        %357 = vmatpush.msra.mxu0 0.0
        %358 = vmatpush.msra.mxu0 0.0
        %359 = vmatpush.msra.mxu0 0.0
        %360 = vmatpush.msra.mxu0 0.0
        %361 = vmatpush.msra.mxu0 0.0
        %362 = vmatpush.msra.mxu0 0.0
        %v363 = vand.u32 %v293, 4294901760
        %v364 = vsub.f32 %v293, %v363
        %v365 = vand.u32 %v364, 4294901760
        %v366 = vsub.f32 %v364, %v365
        %v367 = vand.u32 %v366, 4294901760
        %368 = vmatpush.msra.mxu0 %v367
        %v369 = vand.u32 %v292, 4294901760
        %v370 = vsub.f32 %v292, %v369
        %v371 = vand.u32 %v370, 4294901760
        %v372 = vsub.f32 %v370, %v371
        %v373 = vand.u32 %v372, 4294901760
        %374 = vmatpush.msra.mxu0 %v373
        %v375 = vand.u32 %v291, 4294901760
        %v376 = vsub.f32 %v291, %v375
        %v377 = vand.u32 %v376, 4294901760
        %v378 = vsub.f32 %v376, %v377
        %v379 = vand.u32 %v378, 4294901760
        %380 = vmatpush.msra.mxu0 %v379
        %v381 = vand.u32 %v290, 4294901760
        %v382 = vsub.f32 %v290, %v381
        %v383 = vand.u32 %v382, 4294901760
        %v384 = vsub.f32 %v382, %v383
        %v385 = vand.u32 %v384, 4294901760
        %386 = vmatpush.msra.mxu0 %v385
        %v387 = vand.u32 %v289, 4294901760
        %v388 = vsub.f32 %v289, %v387
        %v389 = vand.u32 %v388, 4294901760
        %v390 = vsub.f32 %v388, %v389
        %v391 = vand.u32 %v390, 4294901760
        %392 = vmatpush.msra.mxu0 %v391
        %v393 = vand.u32 %v288, 4294901760
        %v394 = vsub.f32 %v288, %v393
        %v395 = vand.u32 %v394, 4294901760
        %v396 = vsub.f32 %v394, %v395
        %v397 = vand.u32 %v396, 4294901760
        %398 = vmatpush.msra.mxu0 %v397
        %v399 = vand.u32 %v287, 4294901760
        %v400 = vsub.f32 %v287, %v399
        %v401 = vand.u32 %v400, 4294901760
        %v402 = vsub.f32 %v400, %v401
        %v403 = vand.u32 %v402, 4294901760
        %404 = vmatpush.msra.mxu0 %v403
        %v405 = vand.u32 %v286, 4294901760
        %v406 = vsub.f32 %v286, %v405
        %v407 = vand.u32 %v406, 4294901760
        %v408 = vsub.f32 %v406, %v407
        %v409 = vand.u32 %v408, 4294901760
        %410 = vmatpush.msra.mxu0 %v409
        %v411 = vand.u32 %v320, 4294901760
        %412 = vmatmul.f32.gmra.mxu0 %v411
        %v413 = vpop.f32.mrf.mxu0
        %v414 = vadd.f32 %v353, %v413
        %415 = vdwg.mxu0
        %416 = vmatpush.msra.mxu0 0.0
        %417 = vmatpush.msra.mxu0 0.0
        %418 = vmatpush.msra.mxu0 0.0
        %419 = vmatpush.msra.mxu0 0.0
        %420 = vmatpush.msra.mxu0 0.0
        %421 = vmatpush.msra.mxu0 0.0
        %422 = vmatpush.msra.mxu0 0.0
        %423 = vmatpush.msra.mxu0 0.0
        %v424 = vand.u32 %v293, 4294901760
        %v425 = vsub.f32 %v293, %v424
        %426 = vmatpush.msra.mxu0 %v425
        %v427 = vand.u32 %v292, 4294901760
        %v428 = vsub.f32 %v292, %v427
        %429 = vmatpush.msra.mxu0 %v428
        %v430 = vand.u32 %v291, 4294901760
        %v431 = vsub.f32 %v291, %v430
        %432 = vmatpush.msra.mxu0 %v431
        %v433 = vand.u32 %v290, 4294901760
        %v434 = vsub.f32 %v290, %v433
        %435 = vmatpush.msra.mxu0 %v434
        %v436 = vand.u32 %v289, 4294901760
        %v437 = vsub.f32 %v289, %v436
        %438 = vmatpush.msra.mxu0 %v437
        %v439 = vand.u32 %v288, 4294901760
        %v440 = vsub.f32 %v288, %v439
        %441 = vmatpush.msra.mxu0 %v440
        %v442 = vand.u32 %v287, 4294901760
        %v443 = vsub.f32 %v287, %v442
        %444 = vmatpush.msra.mxu0 %v443
        %v445 = vand.u32 %v286, 4294901760
        %v446 = vsub.f32 %v286, %v445
        %447 = vmatpush.msra.mxu0 %v446
        %v448 = vand.u32 %v320, 4294901760
        %v449 = vsub.f32 %v320, %v448
        %450 = vmatmul.f32.gmra.mxu0 %v449
        %v451 = vpop.f32.mrf.mxu0
        %v452 = vadd.f32 %v414, %v451
        %453 = vdwg.mxu0
        %454 = vmatpush.msra.mxu0 0.0
        %455 = vmatpush.msra.mxu0 0.0
        %456 = vmatpush.msra.mxu0 0.0
        %457 = vmatpush.msra.mxu0 0.0
        %458 = vmatpush.msra.mxu0 0.0
        %459 = vmatpush.msra.mxu0 0.0
        %460 = vmatpush.msra.mxu0 0.0
        %461 = vmatpush.msra.mxu0 0.0
        %v462 = vand.u32 %v293, 4294901760
        %463 = vmatpush.msra.mxu0 %v462
        %v464 = vand.u32 %v292, 4294901760
        %465 = vmatpush.msra.mxu0 %v464
        %v466 = vand.u32 %v291, 4294901760
        %467 = vmatpush.msra.mxu0 %v466
        %v468 = vand.u32 %v290, 4294901760
        %469 = vmatpush.msra.mxu0 %v468
        %v470 = vand.u32 %v289, 4294901760
        %471 = vmatpush.msra.mxu0 %v470
        %v472 = vand.u32 %v288, 4294901760
        %473 = vmatpush.msra.mxu0 %v472
        %v474 = vand.u32 %v287, 4294901760
        %475 = vmatpush.msra.mxu0 %v474
        %v476 = vand.u32 %v286, 4294901760
        %477 = vmatpush.msra.mxu0 %v476
        %v478 = vand.u32 %v320, 4294901760
        %v479 = vsub.f32 %v320, %v478
        %v480 = vand.u32 %v479, 4294901760
        %481 = vmatmul.f32.gmra.mxu0 %v480
        %v482 = vpop.f32.mrf.mxu0
        %v483 = vadd.f32 %v452, %v482
        %484 = vdwg.mxu0
        %485 = vmatpush.msra.mxu0 0.0
        %486 = vmatpush.msra.mxu0 0.0
        %487 = vmatpush.msra.mxu0 0.0
        %488 = vmatpush.msra.mxu0 0.0
        %489 = vmatpush.msra.mxu0 0.0
        %490 = vmatpush.msra.mxu0 0.0
        %491 = vmatpush.msra.mxu0 0.0
        %492 = vmatpush.msra.mxu0 0.0
        %v493 = vand.u32 %v293, 4294901760
        %v494 = vsub.f32 %v293, %v493
        %v495 = vand.u32 %v494, 4294901760
        %496 = vmatpush.msra.mxu0 %v495
        %v497 = vand.u32 %v292, 4294901760
        %v498 = vsub.f32 %v292, %v497
        %v499 = vand.u32 %v498, 4294901760
        %500 = vmatpush.msra.mxu0 %v499
        %v501 = vand.u32 %v291, 4294901760
        %v502 = vsub.f32 %v291, %v501
        %v503 = vand.u32 %v502, 4294901760
        %504 = vmatpush.msra.mxu0 %v503
        %v505 = vand.u32 %v290, 4294901760
        %v506 = vsub.f32 %v290, %v505
        %v507 = vand.u32 %v506, 4294901760
        %508 = vmatpush.msra.mxu0 %v507
        %v509 = vand.u32 %v289, 4294901760
        %v510 = vsub.f32 %v289, %v509
        %v511 = vand.u32 %v510, 4294901760
        %512 = vmatpush.msra.mxu0 %v511
        %v513 = vand.u32 %v288, 4294901760
        %v514 = vsub.f32 %v288, %v513
        %v515 = vand.u32 %v514, 4294901760
        %516 = vmatpush.msra.mxu0 %v515
        %v517 = vand.u32 %v287, 4294901760
        %v518 = vsub.f32 %v287, %v517
        %v519 = vand.u32 %v518, 4294901760
        %520 = vmatpush.msra.mxu0 %v519
        %v521 = vand.u32 %v286, 4294901760
        %v522 = vsub.f32 %v286, %v521
        %v523 = vand.u32 %v522, 4294901760
        %524 = vmatpush.msra.mxu0 %v523
        %v525 = vand.u32 %v320, 4294901760
        %526 = vmatmul.f32.gmra.mxu0 %v525
        %v527 = vpop.f32.mrf.mxu0
        %v528 = vadd.f32 %v483, %v527
        %529 = vdwg.mxu0
        %530 = vmatpush.msra.mxu0 0.0
        %531 = vmatpush.msra.mxu0 0.0
        %532 = vmatpush.msra.mxu0 0.0
        %533 = vmatpush.msra.mxu0 0.0
        %534 = vmatpush.msra.mxu0 0.0
        %535 = vmatpush.msra.mxu0 0.0
        %536 = vmatpush.msra.mxu0 0.0
        %537 = vmatpush.msra.mxu0 0.0
        %v538 = vand.u32 %v293, 4294901760
        %539 = vmatpush.msra.mxu0 %v538
        %v540 = vand.u32 %v292, 4294901760
        %541 = vmatpush.msra.mxu0 %v540
        %v542 = vand.u32 %v291, 4294901760
        %543 = vmatpush.msra.mxu0 %v542
        %v544 = vand.u32 %v290, 4294901760
        %545 = vmatpush.msra.mxu0 %v544
        %v546 = vand.u32 %v289, 4294901760
        %547 = vmatpush.msra.mxu0 %v546
        %v548 = vand.u32 %v288, 4294901760
        %549 = vmatpush.msra.mxu0 %v548
        %v550 = vand.u32 %v287, 4294901760
        %551 = vmatpush.msra.mxu0 %v550
        %v552 = vand.u32 %v286, 4294901760
        %553 = vmatpush.msra.mxu0 %v552
        %v554 = vand.u32 %v320, 4294901760
        %555 = vmatmul.f32.gmra.mxu0 %v554
        %v556 = vpop.f32.mrf.mxu0
        %v557 = vadd.f32 %v528, %v556
        %558 = vdwg.mxu0
        %v559 = vsub.f32 %v304, %v316
        %v561 = vsel %vm318, %v559, 0
        %563 = vmatpush.msra.mxu0 0.0
        %564 = vmatpush.msra.mxu0 0.0
        %565 = vmatpush.msra.mxu0 0.0
        %566 = vmatpush.msra.mxu0 0.0
        %567 = vmatpush.msra.mxu0 0.0
        %568 = vmatpush.msra.mxu0 0.0
        %569 = vmatpush.msra.mxu0 0.0
        %570 = vmatpush.msra.mxu0 0.0
        %v571 = vand.u32 %v293, 4294901760
        %572 = vmatpush.msra.mxu0 %v571
        %v573 = vand.u32 %v292, 4294901760
        %574 = vmatpush.msra.mxu0 %v573
        %v575 = vand.u32 %v291, 4294901760
        %576 = vmatpush.msra.mxu0 %v575
        %v577 = vand.u32 %v290, 4294901760
        %578 = vmatpush.msra.mxu0 %v577
        %v579 = vand.u32 %v289, 4294901760
        %580 = vmatpush.msra.mxu0 %v579
        %v581 = vand.u32 %v288, 4294901760
        %582 = vmatpush.msra.mxu0 %v581
        %v583 = vand.u32 %v287, 4294901760
        %584 = vmatpush.msra.mxu0 %v583
        %v585 = vand.u32 %v286, 4294901760
        %586 = vmatpush.msra.mxu0 %v585
        %v587 = vand.u32 %v561, 4294901760
        %v588 = vsub.f32 %v561, %v587
        %v589 = vand.u32 %v588, 4294901760
        %v590 = vsub.f32 %v588, %v589
        %v591 = vand.u32 %v590, 4294901760
        %592 = vmatmul.f32.gmra.mxu0 %v591
        %v593 = vpop.f32.mrf.mxu0
        %v594 = vadd.f32 1e-06, %v593
        %595 = vdwg.mxu0
        %596 = vmatpush.msra.mxu0 0.0
        %597 = vmatpush.msra.mxu0 0.0
        %598 = vmatpush.msra.mxu0 0.0
        %599 = vmatpush.msra.mxu0 0.0
        %600 = vmatpush.msra.mxu0 0.0
        %601 = vmatpush.msra.mxu0 0.0
        %602 = vmatpush.msra.mxu0 0.0
        %603 = vmatpush.msra.mxu0 0.0
        %v604 = vand.u32 %v293, 4294901760
        %v605 = vsub.f32 %v293, %v604
        %v606 = vand.u32 %v605, 4294901760
        %v607 = vsub.f32 %v605, %v606
        %v608 = vand.u32 %v607, 4294901760
        %609 = vmatpush.msra.mxu0 %v608
        %v610 = vand.u32 %v292, 4294901760
        %v611 = vsub.f32 %v292, %v610
        %v612 = vand.u32 %v611, 4294901760
        %v613 = vsub.f32 %v611, %v612
        %v614 = vand.u32 %v613, 4294901760
        %615 = vmatpush.msra.mxu0 %v614
        %v616 = vand.u32 %v291, 4294901760
        %v617 = vsub.f32 %v291, %v616
        %v618 = vand.u32 %v617, 4294901760
        %v619 = vsub.f32 %v617, %v618
        %v620 = vand.u32 %v619, 4294901760
        %621 = vmatpush.msra.mxu0 %v620
        %v622 = vand.u32 %v290, 4294901760
        %v623 = vsub.f32 %v290, %v622
        %v624 = vand.u32 %v623, 4294901760
        %v625 = vsub.f32 %v623, %v624
        %v626 = vand.u32 %v625, 4294901760
        %627 = vmatpush.msra.mxu0 %v626
        %v628 = vand.u32 %v289, 4294901760
        %v629 = vsub.f32 %v289, %v628
        %v630 = vand.u32 %v629, 4294901760
        %v631 = vsub.f32 %v629, %v630
        %v632 = vand.u32 %v631, 4294901760
        %633 = vmatpush.msra.mxu0 %v632
        %v634 = vand.u32 %v288, 4294901760
        %v635 = vsub.f32 %v288, %v634
        %v636 = vand.u32 %v635, 4294901760
        %v637 = vsub.f32 %v635, %v636
        %v638 = vand.u32 %v637, 4294901760
        %639 = vmatpush.msra.mxu0 %v638
        %v640 = vand.u32 %v287, 4294901760
        %v641 = vsub.f32 %v287, %v640
        %v642 = vand.u32 %v641, 4294901760
        %v643 = vsub.f32 %v641, %v642
        %v644 = vand.u32 %v643, 4294901760
        %645 = vmatpush.msra.mxu0 %v644
        %v646 = vand.u32 %v286, 4294901760
        %v647 = vsub.f32 %v286, %v646
        %v648 = vand.u32 %v647, 4294901760
        %v649 = vsub.f32 %v647, %v648
        %v650 = vand.u32 %v649, 4294901760
        %651 = vmatpush.msra.mxu0 %v650
        %v652 = vand.u32 %v561, 4294901760
        %653 = vmatmul.f32.gmra.mxu0 %v652
        %v654 = vpop.f32.mrf.mxu0
        %v655 = vadd.f32 %v594, %v654
        %656 = vdwg.mxu0
        %657 = vmatpush.msra.mxu0 0.0
        %658 = vmatpush.msra.mxu0 0.0
        %659 = vmatpush.msra.mxu0 0.0
        %660 = vmatpush.msra.mxu0 0.0
        %661 = vmatpush.msra.mxu0 0.0
        %662 = vmatpush.msra.mxu0 0.0
        %663 = vmatpush.msra.mxu0 0.0
        %664 = vmatpush.msra.mxu0 0.0
        %v665 = vand.u32 %v293, 4294901760
        %v666 = vsub.f32 %v293, %v665
        %667 = vmatpush.msra.mxu0 %v666
        %v668 = vand.u32 %v292, 4294901760
        %v669 = vsub.f32 %v292, %v668
        %670 = vmatpush.msra.mxu0 %v669
        %v671 = vand.u32 %v291, 4294901760
        %v672 = vsub.f32 %v291, %v671
        %673 = vmatpush.msra.mxu0 %v672
        %v674 = vand.u32 %v290, 4294901760
        %v675 = vsub.f32 %v290, %v674
        %676 = vmatpush.msra.mxu0 %v675
        %v677 = vand.u32 %v289, 4294901760
        %v678 = vsub.f32 %v289, %v677
        %679 = vmatpush.msra.mxu0 %v678
        %v680 = vand.u32 %v288, 4294901760
        %v681 = vsub.f32 %v288, %v680
        %682 = vmatpush.msra.mxu0 %v681
        %v683 = vand.u32 %v287, 4294901760
        %v684 = vsub.f32 %v287, %v683
        %685 = vmatpush.msra.mxu0 %v684
        %v686 = vand.u32 %v286, 4294901760
        %v687 = vsub.f32 %v286, %v686
        %688 = vmatpush.msra.mxu0 %v687
        %v689 = vand.u32 %v561, 4294901760
        %v690 = vsub.f32 %v561, %v689
        %691 = vmatmul.f32.gmra.mxu0 %v690
        %v692 = vpop.f32.mrf.mxu0
        %v693 = vadd.f32 %v655, %v692
        %694 = vdwg.mxu0
        %695 = vmatpush.msra.mxu0 0.0
        %696 = vmatpush.msra.mxu0 0.0
        %697 = vmatpush.msra.mxu0 0.0
        %698 = vmatpush.msra.mxu0 0.0
        %699 = vmatpush.msra.mxu0 0.0
        %700 = vmatpush.msra.mxu0 0.0
        %701 = vmatpush.msra.mxu0 0.0
        %702 = vmatpush.msra.mxu0 0.0
        %v703 = vand.u32 %v293, 4294901760
        %704 = vmatpush.msra.mxu0 %v703
        %v705 = vand.u32 %v292, 4294901760
        %706 = vmatpush.msra.mxu0 %v705
        %v707 = vand.u32 %v291, 4294901760
        %708 = vmatpush.msra.mxu0 %v707
        %v709 = vand.u32 %v290, 4294901760
        %710 = vmatpush.msra.mxu0 %v709
        %v711 = vand.u32 %v289, 4294901760
        %712 = vmatpush.msra.mxu0 %v711
        %v713 = vand.u32 %v288, 4294901760
        %714 = vmatpush.msra.mxu0 %v713
        %v715 = vand.u32 %v287, 4294901760
        %716 = vmatpush.msra.mxu0 %v715
        %v717 = vand.u32 %v286, 4294901760
        %718 = vmatpush.msra.mxu0 %v717
        %v719 = vand.u32 %v561, 4294901760
        %v720 = vsub.f32 %v561, %v719
        %v721 = vand.u32 %v720, 4294901760
        %722 = vmatmul.f32.gmra.mxu0 %v721
        %v723 = vpop.f32.mrf.mxu0
        %v724 = vadd.f32 %v693, %v723
        %725 = vdwg.mxu0
        %726 = vmatpush.msra.mxu0 0.0
        %727 = vmatpush.msra.mxu0 0.0
        %728 = vmatpush.msra.mxu0 0.0
        %729 = vmatpush.msra.mxu0 0.0
        %730 = vmatpush.msra.mxu0 0.0
        %731 = vmatpush.msra.mxu0 0.0
        %732 = vmatpush.msra.mxu0 0.0
        %733 = vmatpush.msra.mxu0 0.0
        %v734 = vand.u32 %v293, 4294901760
        %v735 = vsub.f32 %v293, %v734
        %v736 = vand.u32 %v735, 4294901760
        %737 = vmatpush.msra.mxu0 %v736
        %v738 = vand.u32 %v292, 4294901760
        %v739 = vsub.f32 %v292, %v738
        %v740 = vand.u32 %v739, 4294901760
        %741 = vmatpush.msra.mxu0 %v740
        %v742 = vand.u32 %v291, 4294901760
        %v743 = vsub.f32 %v291, %v742
        %v744 = vand.u32 %v743, 4294901760
        %745 = vmatpush.msra.mxu0 %v744
        %v746 = vand.u32 %v290, 4294901760
        %v747 = vsub.f32 %v290, %v746
        %v748 = vand.u32 %v747, 4294901760
        %749 = vmatpush.msra.mxu0 %v748
        %v750 = vand.u32 %v289, 4294901760
        %v751 = vsub.f32 %v289, %v750
        %v752 = vand.u32 %v751, 4294901760
        %753 = vmatpush.msra.mxu0 %v752
        %v754 = vand.u32 %v288, 4294901760
        %v755 = vsub.f32 %v288, %v754
        %v756 = vand.u32 %v755, 4294901760
        %757 = vmatpush.msra.mxu0 %v756
        %v758 = vand.u32 %v287, 4294901760
        %v759 = vsub.f32 %v287, %v758
        %v760 = vand.u32 %v759, 4294901760
        %761 = vmatpush.msra.mxu0 %v760
        %v762 = vand.u32 %v286, 4294901760
        %v763 = vsub.f32 %v286, %v762
        %v764 = vand.u32 %v763, 4294901760
        %765 = vmatpush.msra.mxu0 %v764
        %v766 = vand.u32 %v561, 4294901760
        %767 = vmatmul.f32.gmra.mxu0 %v766
        %v768 = vpop.f32.mrf.mxu0
        %v769 = vadd.f32 %v724, %v768
        %770 = vdwg.mxu0
        %771 = vmatpush.msra.mxu0 0.0
        %772 = vmatpush.msra.mxu0 0.0
        %773 = vmatpush.msra.mxu0 0.0
        %774 = vmatpush.msra.mxu0 0.0
        %775 = vmatpush.msra.mxu0 0.0
        %776 = vmatpush.msra.mxu0 0.0
        %777 = vmatpush.msra.mxu0 0.0
        %778 = vmatpush.msra.mxu0 0.0
        %v779 = vand.u32 %v293, 4294901760
        %780 = vmatpush.msra.mxu0 %v779
        %v781 = vand.u32 %v292, 4294901760
        %782 = vmatpush.msra.mxu0 %v781
        %v783 = vand.u32 %v291, 4294901760
        %784 = vmatpush.msra.mxu0 %v783
        %v785 = vand.u32 %v290, 4294901760
        %786 = vmatpush.msra.mxu0 %v785
        %v787 = vand.u32 %v289, 4294901760
        %788 = vmatpush.msra.mxu0 %v787
        %v789 = vand.u32 %v288, 4294901760
        %790 = vmatpush.msra.mxu0 %v789
        %v791 = vand.u32 %v287, 4294901760
        %792 = vmatpush.msra.mxu0 %v791
        %v793 = vand.u32 %v286, 4294901760
        %794 = vmatpush.msra.mxu0 %v793
        %v795 = vand.u32 %v561, 4294901760
        %796 = vmatmul.f32.gmra.mxu0 %v795
        %v797 = vpop.f32.mrf.mxu0
        %v798 = vadd.f32 %v769, %v797
        %799 = vdwg.mxu0
        %v800 = vmul.f32 %v557, %v557
        %801 = vadd.xlane.f32.xlu0 %v800
        %v802 = vpop.xlane.xlu0 %801
        %v803 = vrsqrt.pop %v802
        %v804 = vmul.f32 %v803, %v802
        %v805 = vmul.f32 %v804, %v803
        %v806 = vmul.f32 0.5, %v805
        %v807 = vsub.f32 1.5, %v806
        %v808 = vmul.f32 %v803, %v807
        %v809 = vmul.f32 %v802, %v808
        %vm810 = vcmp.eq.f32.partialorder %v802, inf
        %v811 = vsel %vm810, %v802, %v809
        %vm812 = vcmp.eq.f32.partialorder %v802, 0.0
        %v813 = vand.u32 %v802, 2147483648
        %v814 = vsel %vm812, %v813, %v811
        %v815 = vmul.f32 %v798, %v798
        %816 = vadd.xlane.f32.xlu0 %v815
        %v817 = vpop.xlane.xlu0 %816
        %v818 = vrsqrt.pop %v817
        %v819 = vmul.f32 %v818, %v817
        %v820 = vmul.f32 %v819, %v818
        %v821 = vmul.f32 0.5, %v820
        %v822 = vsub.f32 1.5, %v821
        %v823 = vmul.f32 %v818, %v822
        %v824 = vmul.f32 %v817, %v823
        %vm825 = vcmp.eq.f32.partialorder %v817, inf
        %v826 = vsel %vm825, %v817, %v824
        %vm827 = vcmp.eq.f32.partialorder %v817, 0.0
        %v828 = vand.u32 %v817, 2147483648
        %v829 = vsel %vm827, %v828, %v826
        %v830 = vsub.f32 %v814, %v829
        %v831 = vadd.f32 %v830, 0.2
        %v832 = vmax.f32 %v831, 0.0
        %s833 = smul.u32 %s22, 2
        %s834 = sadd.s32 %s833, %s23
        %s835 = smul.u32 %s834, 8
        %v836 = vlaneseq
        %v837 = vshrl.u32 %v836, 7
        %v838 = vstv %s835
        %v839 = vadd.s32 %v837, %v838
        %vm840 = vcmp.lt.s32.totalorder %v839, 20
        %v841 = vsel %vm840, %v832, 0.0
        %v842 = vld [vmem:[%s256] sm:$0xff]
        %vm843 = vcmask 7168
        %v844 = vsel %vm843, %v841, 0.0
        %845 = vadd.xlane.f32.xlu0 %v844
        %v846 = vpop.xlane.xlu0 %845
        %v847 = vrot.slane %v846, 4
        %v848 = vadd.f32 %v846, %v847
        %v849 = vrot.slane %v848, 2
        %v850 = vadd.f32 %v848, %v849
        %v851 = vrot.slane %v850, 1
        %v852 = vadd.f32 %v850, %v851
        %s853 = vtos %v852
        %v854 = vstv %s853
        %v855 = vadd.f32 %v842, %v854
        %856 = vst [vmem:[%s256] sm:$0xff] %v855
        %s857 = sand.u32 %s149, 1
        %s858 = scalar_lea.sflag [#allocation3], %s857
        %s859 = sand.u32 %s149, 1
        %s860 = smul.addr %s859, 8
        %s861 = scalar_lea.vmem [#allocation2], %s860
        // Predicated region
        $region41: #{tpu_custom_call.1} parent=35 // pred_check
          %p862 = pneg %p159
        $region42: #{tpu_custom_call.1} parent=35 // pred_check_branch
          %864 = sbr.rel (%p862) target = $region44
        $region43: #{tpu_custom_call.1} parent=35 // pred_region
          %866 = vsyncadd %s858, 0
          %s867 = smul.addr %s22, 8
          %s868 = scalar_lea.hbm %s4, %s867
          %s870 = sshll.u32 %s861, 4
          %s871 = int_to_ptr.vmem [resolvable:$true] %s870
          %s872 = sshll.u32 %s868, 4
          %s873 = int_to_ptr.hbm [resolvable:$true] %s872
          %875 = dma.vmem_to_hbm [thread:$0]  %s871, 128, %s873, %s858
        $region44: #{tpu_custom_call.1} parent=35 // pred_fallthru
          _
      $region36: #{tpu_custom_call.1} parent=5 // pred_fallthru
        _
      %p876 = scmp.le.s32.totalorder 2, %s13
      // Predicated region
      $region45: #{tpu_custom_call.1} parent=5 // pred_check
        %p877 = pneg %p876
      $region46: #{tpu_custom_call.1} parent=5 // pred_check_branch
        %879 = sbr.rel (%p877) target = $region48
      $region47: #{tpu_custom_call.1} parent=5 // pred_region
        %s880 = ssub.s32 %s13, 2
        // Predicated region
        $region49: #{tpu_custom_call.1} parent=47 // pred_check
          %p881 = pneg %p165
        $region50: #{tpu_custom_call.1} parent=47 // pred_check_branch
          %883 = sbr.rel (%p881) target = $region52
        $region51: #{tpu_custom_call.1} parent=47 // pred_region
          %s884 = sand.u32 %s150, 1
          %s885 = scalar_lea.sflag [#allocation3], %s884
          %s886 = sand.u32 %s150, 1
          %s887 = smul.addr %s886, 8
          %s888 = scalar_lea.vmem [#allocation2], %s887
          %890 = dma.done %s885, 128
        $region52: #{tpu_custom_call.1} parent=47 // pred_fallthru
          _
      $region48: #{tpu_custom_call.1} parent=5 // pred_fallthru
        _
    $region6: #{tpu_custom_call.1} parent=1 // loop_footer
      %s17 = sadd.s32 1, %s13
    $region7: #{tpu_custom_call.1} parent=1 // loop_footer_branch
      %12 = sbr.rel target = $region3
    $region8: #{tpu_custom_call.1} parent=1 // loop_exit
      _
    %891 = vsyncpa [#allocation3], 1
    %s892 = scalar_lea.sflag [#allocation3], 1
    %893 = vsyncpa %s892, 1

</llo_original>
